<compile_context>
chip_gen: v7x
topology: tpu7x:2x2x1
jax: 0.10.0
libtpu: 0.0.40
codegen_flags: <defaults>
</compile_context>

<pallas_src>
import functools
import random
import numpy as np
import jax
import jax.numpy as jnp
from jax.experimental import pallas as pl
from jax.experimental.pallas import tpu as pltpu


_VMEM_BUDGET = 40 * 1024 * 1024     # keep tile working set under this
_VMEM_LIMIT = 48 * 1024 * 1024      # scoped VMEM limit (safe on v5e/v6e/v7x)


def _round_up(x, m):
    return ((x + m - 1) // m) * m


def _next_pow2(x):
    return 1 if x <= 1 else 1 << (int(x) - 1).bit_length()


def _layer_plan(B, U, Din, out_pad, out_bytes):
    """Pick padded sizes / tiles / residency for one layer (coarse buckets)."""
    TU_CAP = 1024
    up2 = max(128, _next_pow2(U))
    if up2 <= TU_CAP:
        U_pad, TU = up2, up2
    else:
        TU = TU_CAP
        U_pad = _round_up(U, TU)

    # B padded to power-of-two buckets; multiples of 32 (int8 mask sublanes).
    if B <= 512:
        B_pad = max(32, _next_pow2(B))
    else:
        B_pad = _round_up(B, 256)
    TB = min(256, B_pad)
    # Give the "parallel" B axis >= 2 blocks so v7x's 2nd TensorCore is used;
    # fall back gracefully for tiny batches (keep TB a multiple of 32).
    if B_pad // TB < 2 and B_pad // 2 >= 32:
        TB = B_pad // 2

    def need(tb, tu, resident):
        n = 2 * tb * tu                                     # int8 mask (x2 buf)
        n += (2 * U_pad * Din * 2) if resident else (2 * tu * Din * 2)
        n += 2 * tb * Din * 2                               # self feats (bf16)
        n += 2 * tb * 4                                     # inv counts (f32)
        n += 2 * 2 * Din * out_pad * 2                      # both weights (bf16)
        n += 2 * tb * out_pad * out_bytes                   # output tile
        n += tb * Din * 4                                   # f32 accumulator
        return n

    emb_resident = (2 * U_pad * Din * 2) <= (12 * 1024 * 1024)
    while need(TB, TU, emb_resident) > _VMEM_BUDGET:
        if emb_resident:
            emb_resident = False
        elif TU > 128:
            TU //= 2          # powers of two keep U_pad % TU == 0
        elif TB > 32:
            TB //= 2
        else:
            break
    return B_pad, TB, U_pad, TU, emb_resident


# ----------------------------------------------------------------------------
# Fused Pallas kernel: one GraphSage layer
#   agg  = (mask @ emb) * inv_count          (MEAN aggregation)
#   out  = relu(self_feats @ W_self^T + agg @ W_agg^T)
# Grid = (B tiles ["parallel"], U tiles ["arbitrary" reduction]).
# ----------------------------------------------------------------------------
def _fused_sage_kernel(mask_ref, emb_ref, self_ref, inv_ref, wself_ref,
                       wagg_ref, out_ref, agg_acc, *, tu, emb_resident):
    u = pl.program_id(1)

    @pl.when(u == 0)
    def _():
        agg_acc[...] = jnp.zeros_like(agg_acc)

    # int8 (0/1) mask -> bf16 for the MXU (exact); cast hides under the matmul.
    mask = mask_ref[...].astype(jnp.float32).astype(jnp.bfloat16)
    if emb_resident:
        # emb is VMEM-resident (single DMA for the whole grid); slice our U tile.
        emb = emb_ref[pl.ds(pl.multiple_of(u * tu, tu), tu), :]
    else:
        emb = emb_ref[...]
    agg_acc[...] += jnp.dot(mask, emb, preferred_element_type=jnp.float32)

    @pl.when(u == pl.num_programs(1) - 1)
    def _():
        # Exact host-computed 1/|N(v)| (f32), applied once per B tile.
        agg = (agg_acc[...] * inv_ref[...]).astype(jnp.bfloat16)
        z = jnp.dot(self_ref[...], wself_ref[...],
                    preferred_element_type=jnp.float32)
        z = z + jnp.dot(agg, wagg_ref[...],
                        preferred_element_type=jnp.float32)
        out_ref[...] = jnp.maximum(z, 0.0).astype(out_ref.dtype)


def pallas_fused_sage_layer(mask_i8, inv_cnt, emb_p, self_p, w_self_t, w_agg_t,
                            plan, out_dtype):
    """One fused GraphSage layer.

    mask_i8:  [B_pad, U_pad] int8 0/1 (host-built at padded shape)
    inv_cnt:  [B_pad, 1] f32 exact 1/max(|N(v)|, 1)
    emb_p:    [U_pad, Din]  bf16 neighbor embeddings (rows padded, cols not)
    self_p:   [B_pad, Din]  bf16 batch-node embeddings
    w_self_t / w_agg_t: [Din, OUT_pad] bf16 pre-transposed, lane-padded weights
    returns:  [B_pad, OUT_pad] out_dtype
    """
    B_pad, TB, U_pad, TU, emb_resident = plan
    Din = emb_p.shape[1]
    out_pad = w_self_t.shape[1]

    kernel = functools.partial(_fused_sage_kernel, tu=TU,
                               emb_resident=emb_resident)
    emb_spec = (pl.BlockSpec((U_pad, Din), lambda i, u: (0, 0)) if emb_resident
                else pl.BlockSpec((TU, Din), lambda i, u: (u, 0)))

    return pl.pallas_call(
        kernel,
        out_shape=jax.ShapeDtypeStruct((B_pad, out_pad), out_dtype),
        grid_spec=pltpu.PrefetchScalarGridSpec(
            num_scalar_prefetch=0,
            grid=(B_pad // TB, U_pad // TU),
            in_specs=[
                pl.BlockSpec((TB, TU), lambda i, u: (i, u)),        # mask int8
                emb_spec,                                           # emb bf16
                pl.BlockSpec((TB, Din), lambda i, u: (i, 0)),       # self bf16
                pl.BlockSpec((TB, 1), lambda i, u: (i, 0)),         # 1/count f32
                pl.BlockSpec((Din, out_pad), lambda i, u: (0, 0)),  # W_self^T
                pl.BlockSpec((Din, out_pad), lambda i, u: (0, 0)),  # W_agg^T
            ],
            out_specs=pl.BlockSpec((TB, out_pad), lambda i, u: (i, 0)),
            scratch_shapes=[pltpu.VMEM((TB, Din), jnp.float32)],    # agg acc
        ),
        compiler_params=pltpu.CompilerParams(
            dimension_semantics=("parallel", "arbitrary"),
            vmem_limit_bytes=_VMEM_LIMIT),
    )(mask_i8, emb_p, self_p, inv_cnt, w_self_t, w_agg_t)


# ----------------------------------------------------------------------------
# GraphSage model (host-side graph bookkeeping + fused Pallas compute)
# ----------------------------------------------------------------------------
class GraphSageJAX:
    def __init__(self, num_layers, input_size, out_size, raw_features, adj_lists,
                 gcn=False, agg_func='MEAN', seed=0):
        assert not gcn and agg_func == 'MEAN'
        self.num_layers = num_layers
        self.input_size = input_size
        self.out_size = out_size
        # bf16 copy used as layer-1 embeddings (all hot-path inputs are bf16).
        self.raw_features_bf16 = jnp.asarray(raw_features, jnp.bfloat16)
        self.adj_lists = adj_lists
        self.gcn = gcn
        self.agg_func = agg_func

        self.out_pad = _round_up(out_size, 128)
        key = jax.random.PRNGKey(seed)
        # Per layer: Xavier-uniform weight [out, 2*in] (PyTorch convention),
        # split / transpose / lane-pad (output dim only) / bf16 ONCE here.
        self.weights = []
        for index in range(1, num_layers + 1):
            layer_size = out_size if index != 1 else input_size
            fan_in, fan_out = 2 * layer_size, out_size
            bound = float(np.sqrt(6.0 / (fan_in + fan_out)))
            key, sub = jax.random.split(key)
            w = jax.random.uniform(sub, (out_size, 2 * layer_size),
                                   minval=-bound, maxval=bound,
                                   dtype=jnp.float32)
            pad_cols = ((0, 0), (0, self.out_pad - out_size))
            w_self_t = jnp.pad(w[:, :layer_size].T, pad_cols).astype(jnp.bfloat16)
            w_agg_t = jnp.pad(w[:, layer_size:].T, pad_cols).astype(jnp.bfloat16)
            self.weights.append((w_self_t, w_agg_t))

    # ---- host-side graph glue (set ops / dict lookups; no Pallas equivalent) ----
    def _get_unique_neighs_list(self, nodes, num_sample=10):
        to_neighs = [self.adj_lists[int(node)] for node in nodes]
        samp_neighs = []
        for to_neigh in to_neighs:
            if len(to_neigh) >= num_sample:
                samp_neighs.append(set(random.sample(sorted(to_neigh), num_sample)))
            else:
                samp_neighs.append(set(to_neigh))
        samp_neighs = [sn | {nodes[i]} for i, sn in enumerate(samp_neighs)]
        unique_nodes_list = list(set.union(*samp_neighs))
        unique_nodes = {n: i for i, n in enumerate(unique_nodes_list)}
        return samp_neighs, unique_nodes, unique_nodes_list

    def forward(self, nodes_batch):
        lower_layer_nodes = list(nodes_batch)
        nodes_batch_layers = [(lower_layer_nodes,)]
        for _ in range(self.num_layers):
            samp, ndict, lower_layer_nodes = self._get_unique_neighs_list(lower_layer_nodes)
            nodes_batch_layers.insert(0, (lower_layer_nodes, samp, ndict))
        assert len(nodes_batch_layers) == self.num_layers + 1

        pre_hidden = self.raw_features_bf16
        for index in range(1, self.num_layers + 1):
            nb = nodes_batch_layers[index][0]
            unique_nodes_list, samp_neighs, unique_nodes = nodes_batch_layers[index - 1]
            assert len(nb) == len(samp_neighs)
            assert all(nb[i] in samp_neighs[i] for i in range(len(samp_neighs)))
            if not self.gcn:
                samp_neighs = [samp_neighs[i] - {nb[i]} for i in range(len(samp_neighs))]

            B, U, Din = len(nb), len(unique_nodes), pre_hidden.shape[1]
            out_dtype = jnp.float32 if index == self.num_layers else jnp.bfloat16
            plan = _layer_plan(B, U, Din, self.out_pad,
                               np.dtype(out_dtype).itemsize)
            B_pad, _, U_pad, _, _ = plan

            # Host-built mask (padded, int8) + exact inverse neighbor counts.
            # TODO(synk): replace the dense O(B*U) mask + XLA gathers with
            # scalar-prefetched neighbor index tables (PrefetchScalarGridSpec +
            # pl.Element row gather) for production graph sizes.
            mask = np.zeros((B_pad, U_pad), dtype=np.int8)
            inv = np.ones((B_pad, 1), dtype=np.float32)
            for i, sn in enumerate(samp_neighs):
                for n in sn:
                    mask[i, unique_nodes[n]] = 1
                inv[i, 0] = 1.0 / max(len(sn), 1)

            # Neighbor embeddings (rows padded only; feature dim kept at true Din).
            if pre_hidden.shape[0] == U:
                embed_matrix = pre_hidden
            else:
                embed_matrix = pre_hidden[jnp.asarray(unique_nodes_list, jnp.int32)]
            emb_p = jnp.pad(embed_matrix, ((0, U_pad - U), (0, 0)))

            # Self features of the batch nodes.
            if index > 1:
                nb_idx = [unique_nodes[x] for x in nb]
            else:
                nb_idx = nb
            self_p = jnp.pad(pre_hidden[jnp.asarray(nb_idx, jnp.int32)],
                             ((0, B_pad - B), (0, 0)))

            w_self_t, w_agg_t = self.weights[index - 1]
            out = pallas_fused_sage_layer(
                jnp.asarray(mask), jnp.asarray(inv), emb_p, self_p,
                w_self_t, w_agg_t, plan, out_dtype)
            pre_hidden = out[:B, :self.out_size]
        return pre_hidden


# ----------------------------------------------------------------------------
if __name__ == "__main__":
    random.seed(0)
    np.random.seed(0)

    num_nodes = 64
    input_size = 32
    out_size = 32
    num_layers = 2
    batch_nodes = list(range(16))

    # Synthetic deterministic graph: ring-ish adjacency, no self loops.
    adj_lists = {}
    for i in range(num_nodes):
        adj_lists[i] = {(i + 1) % num_nodes, (i + 2) % num_nodes,
                        (i - 1) % num_nodes, (i - 2) % num_nodes,
                        (i + 7) % num_nodes}

    key = jax.random.PRNGKey(0)
    raw_features = jax.random.normal(key, (num_nodes, input_size), dtype=jnp.float32)

    model = GraphSageJAX(num_layers, input_size, out_size, raw_features, adj_lists,
                         gcn=False, agg_func='MEAN', seed=0)
    out = model.forward(batch_nodes)
    out = jax.block_until_ready(out)
    assert out.shape == (len(batch_nodes), out_size)
    assert out.dtype == jnp.float32
    assert bool(jnp.all(jnp.isfinite(out)))
    print("KERNEL_OK")
</pallas_src>

<mosaic_0001>
module attributes {stable_mosaic.version = 11 : i64} {
  func.func @_fused_sage_kernel(%arg0: i32, %arg1: i32, %arg2: memref<32x128xi8, #tpu.memory_space<vmem>>, %arg3: memref<128x32xbf16, #tpu.memory_space<vmem>>, %arg4: memref<32x32xbf16, #tpu.memory_space<vmem>>, %arg5: memref<32x1xf32, #tpu.memory_space<vmem>>, %arg6: memref<32x128xbf16, #tpu.memory_space<vmem>>, %arg7: memref<32x128xbf16, #tpu.memory_space<vmem>>, %arg8: memref<32x128xbf16, #tpu.memory_space<vmem>>, %arg9: memref<32x32xf32, #tpu.memory_space<vmem>>) attributes {dimension_semantics = [#tpu.dimension_semantics<parallel>, #tpu.dimension_semantics<arbitrary>], iteration_bounds = array<i64: 1, 1>, scalar_prefetch = 0 : i64, scratch_operands = 1 : i64, tpu.core_type = #tpu.core_type<tc>, window_params = [{transform_indices = @transform_0, window_bounds = array<i64: 32, 128>}, {pipeline_mode = #tpu.pipeline_mode<synchronous>, transform_indices = @transform_1, window_bounds = array<i64: 128, 32>}, {transform_indices = @transform_2, window_bounds = array<i64: 32, 32>}, {transform_indices = @transform_3, window_bounds = array<i64: 32, 1>}, {pipeline_mode = #tpu.pipeline_mode<synchronous>, transform_indices = @transform_4, window_bounds = array<i64: 32, 128>}, {pipeline_mode = #tpu.pipeline_mode<synchronous>, transform_indices = @transform_5, window_bounds = array<i64: 32, 128>}, {transform_indices = @transform_6, window_bounds = array<i64: 32, 128>}]} {
    %c0_i32 = arith.constant 0 : i32
    %0 = arith.cmpi eq, %arg1, %c0_i32 : i32
    %1 = arith.extui %0 : i1 to i32
    %c0_i32_0 = arith.constant 0 : i32
    %2 = arith.cmpi ne, %1, %c0_i32_0 : i32
    scf.if %2 {
      %cst_9 = arith.constant 0.000000e+00 : f32
      %17 = vector.broadcast %cst_9 : f32 to vector<32x32xf32>
      %c0_10 = arith.constant 0 : index
      %c0_11 = arith.constant 0 : index
      %18 = vector.load %arg9[%c0_10, %c0_11] : memref<32x32xf32, #tpu.memory_space<vmem>>, vector<32x32xf32>
      tpu.vector_store %arg9[%c0_10, %c0_11], %17 {strides = array<i32>} : memref<32x32xf32, #tpu.memory_space<vmem>>, vector<32x32xf32>,
    } else {
    }
    %c0 = arith.constant 0 : index
    %c0_1 = arith.constant 0 : index
    %3 = vector.load %arg2[%c0, %c0_1] : memref<32x128xi8, #tpu.memory_space<vmem>>, vector<32x128xi8>
    %4 = arith.sitofp %3 : vector<32x128xi8> to vector<32x128xf32>
    %5 = arith.truncf %4 : vector<32x128xf32> to vector<32x128xbf16>
    %c128_i32 = arith.constant 128 : i32
    %6 = arith.muli %arg1, %c128_i32 : i32
    %7 = tpu.assume_multiple %6, 128 : i32
    %8 = arith.index_cast %7 : i32 to index
    %c0_2 = arith.constant 0 : index
    %9 = vector.load %arg3[%8, %c0_2] : memref<128x32xbf16, #tpu.memory_space<vmem>>, vector<128x32xbf16>
    %c0_3 = arith.constant 0 : index
    %c0_4 = arith.constant 0 : index
    %10 = vector.load %arg9[%c0_3, %c0_4] : memref<32x32xf32, #tpu.memory_space<vmem>>, vector<32x32xf32>
    %cst = arith.constant dense<0.000000e+00> : vector<32x32xf32>
    %11 = tpu.matmul %5, %9, %cst {dimension_numbers = #tpu.dot_dimension_numbers<[1], [0], [0], [1], [0, 0, 1, 1], [], []>} : vector<32x128xbf16>, vector<128x32xbf16>, vector<32x32xf32> -> vector<32x32xf32>
    %12 = arith.addf %10, %11 : vector<32x32xf32>
    %c0_5 = arith.constant 0 : index
    %c0_6 = arith.constant 0 : index
    %13 = vector.load %arg9[%c0_5, %c0_6] : memref<32x32xf32, #tpu.memory_space<vmem>>, vector<32x32xf32>
    tpu.vector_store %arg9[%c0_5, %c0_6], %12 {strides = array<i32>} : memref<32x32xf32, #tpu.memory_space<vmem>>, vector<32x32xf32>,
    %c0_i32_7 = arith.constant 0 : i32
    %14 = arith.cmpi eq, %arg1, %c0_i32_7 : i32
    %15 = arith.extui %14 : i1 to i32
    %c0_i32_8 = arith.constant 0 : i32
    %16 = arith.cmpi ne, %15, %c0_i32_8 : i32
    scf.if %16 {
      %c0_9 = arith.constant 0 : index
      %c0_10 = arith.constant 0 : index
      %17 = vector.load %arg9[%c0_9, %c0_10] : memref<32x32xf32, #tpu.memory_space<vmem>>, vector<32x32xf32>
      %c0_11 = arith.constant 0 : index
      %c0_12 = arith.constant 0 : index
      %18 = vector.load %arg5[%c0_11, %c0_12] : memref<32x1xf32, #tpu.memory_space<vmem>>, vector<32x1xf32>
      %19 = vector.broadcast %18 : vector<32x1xf32> to vector<32x32xf32>
      %20 = arith.mulf %17, %19 : vector<32x32xf32>
      %21 = arith.truncf %20 : vector<32x32xf32> to vector<32x32xbf16>
      %c0_13 = arith.constant 0 : index
      %c0_14 = arith.constant 0 : index
      %22 = vector.load %arg4[%c0_13, %c0_14] : memref<32x32xbf16, #tpu.memory_space<vmem>>, vector<32x32xbf16>
      %c0_15 = arith.constant 0 : index
      %c0_16 = arith.constant 0 : index
      %23 = vector.load %arg6[%c0_15, %c0_16] : memref<32x128xbf16, #tpu.memory_space<vmem>>, vector<32x128xbf16>
      %cst_17 = arith.constant dense<0.000000e+00> : vector<32x128xf32>
      %24 = tpu.matmul %22, %23, %cst_17 {dimension_numbers = #tpu.dot_dimension_numbers<[1], [0], [0], [1], [0, 0, 1, 1], [], []>} : vector<32x32xbf16>, vector<32x128xbf16>, vector<32x128xf32> -> vector<32x128xf32>
      %c0_18 = arith.constant 0 : index
      %c0_19 = arith.constant 0 : index
      %25 = vector.load %arg7[%c0_18, %c0_19] : memref<32x128xbf16, #tpu.memory_space<vmem>>, vector<32x128xbf16>
      %cst_20 = arith.constant dense<0.000000e+00> : vector<32x128xf32>
      %26 = tpu.matmul %21, %25, %cst_20 {dimension_numbers = #tpu.dot_dimension_numbers<[1], [0], [0], [1], [0, 0, 1, 1], [], []>} : vector<32x32xbf16>, vector<32x128xbf16>, vector<32x128xf32> -> vector<32x128xf32>
      %27 = arith.addf %24, %26 : vector<32x128xf32>
      %cst_21 = arith.constant 0.000000e+00 : f32
      %28 = vector.broadcast %cst_21 : f32 to vector<32x128xf32>
      %29 = arith.maximumf %27, %28 : vector<32x128xf32>
      %30 = arith.truncf %29 : vector<32x128xf32> to vector<32x128xbf16>
      %c0_22 = arith.constant 0 : index
      %c0_23 = arith.constant 0 : index
      %31 = vector.load %arg8[%c0_22, %c0_23] : memref<32x128xbf16, #tpu.memory_space<vmem>>, vector<32x128xbf16>
      tpu.vector_store %arg8[%c0_22, %c0_23], %30 {strides = array<i32>} : memref<32x128xbf16, #tpu.memory_space<vmem>>, vector<32x128xbf16>,
    } else {
    }
    return
  }
  func.func @transform_0(%arg0: i32, %arg1: i32) -> (i32, i32) {
    %c0_i32 = arith.constant 0 : i32
    return %arg0, %arg1 : i32, i32
  }
  func.func @transform_1(%arg0: i32, %arg1: i32) -> (i32, i32) {
    %c0_i32 = arith.constant 0 : i32
    %c0_i32_0 = arith.constant 0 : i32
    %c0_i32_1 = arith.constant 0 : i32
    return %c0_i32, %c0_i32_0 : i32, i32
  }
  func.func @transform_2(%arg0: i32, %arg1: i32) -> (i32, i32) {
    %c0_i32 = arith.constant 0 : i32
    %c0_i32_0 = arith.constant 0 : i32
    return %arg0, %c0_i32 : i32, i32
  }
  func.func @transform_3(%arg0: i32, %arg1: i32) -> (i32, i32) {
    %c0_i32 = arith.constant 0 : i32
    %c0_i32_0 = arith.constant 0 : i32
    return %arg0, %c0_i32 : i32, i32
  }
  func.func @transform_4(%arg0: i32, %arg1: i32) -> (i32, i32) {
    %c0_i32 = arith.constant 0 : i32
    %c0_i32_0 = arith.constant 0 : i32
    %c0_i32_1 = arith.constant 0 : i32
    return %c0_i32, %c0_i32_0 : i32, i32
  }
  func.func @transform_5(%arg0: i32, %arg1: i32) -> (i32, i32) {
    %c0_i32 = arith.constant 0 : i32
    %c0_i32_0 = arith.constant 0 : i32
    %c0_i32_1 = arith.constant 0 : i32
    return %c0_i32, %c0_i32_0 : i32, i32
  }
  func.func @transform_6(%arg0: i32, %arg1: i32) -> (i32, i32) {
    %c0_i32 = arith.constant 0 : i32
    %c0_i32_0 = arith.constant 0 : i32
    return %arg0, %c0_i32 : i32, i32
  }
}

</mosaic_0001>

<llo_original>
// kernel: tpu_custom_call.1
$region0: #{tpu_custom_call.1}
  #allocation0 [shape = 'u32[]', space=smem, size = 0x4, offset = 0x4, fixed_abs, tag = 'smem constant byte address 0x4 - core index']
  #allocation1 [shape = 'u32[144,128]{1,0:T(1,128)}', space=vmem, size = 0x12000, scoped, tag = 'internal scratch']
  #allocation2 [shape = 'f32[32,32]{1,0:T(8,128)}', space=vmem, size = 0x4000, scoped, tag = 'scratch operand']
  %s0 = inlined_call_operand.vmem [shape: s8[32,128], index: 0, kind: input, shape index: {}]
  %s1 = inlined_call_operand.vmem [shape: bf16[128,32], index: 1, kind: input, shape index: {}]
  %s2 = inlined_call_operand.vmem [shape: bf16[32,32], index: 2, kind: input, shape index: {}]
  %s3 = inlined_call_operand.vmem [shape: f32[32,1], index: 3, kind: input, shape index: {}]
  %s4 = inlined_call_operand.vmem [shape: bf16[32,128], index: 4, kind: input, shape index: {}]
  %s5 = inlined_call_operand.vmem [shape: bf16[32,128], index: 5, kind: input, shape index: {}]
  %s6 = inlined_call_operand.hbm [shape: bf16[32,128], index: 6, kind: output, shape index: {}]
  %s7 = sld [smem:[#allocation0]]
  $region42: #{tpu_custom_call.1} parent=0
    _
  %s9 = ssub.s32 1, %s7
  %s10 = scalar_select 0, %s9, %s7
  $region1: #{tpu_custom_call.1} parent=0
    #allocation3 [shape = 'u8[8192]{0}', space=vmem, size = 0x2000, scoped, tag = 'output window, operand 0, single buffered']
    #allocation4 [shape = 's32[1]{0}', space=sflag, size = 0x4, scoped, tag = 'scoped memory for tpu_custom_call.1']
    %11 = vsyncpa [#allocation4], 0
    // Predicated region
    $region2: #{tpu_custom_call.1} parent=1 // pred_check
      _
    $region3: #{tpu_custom_call.1} parent=1 // pred_check_branch
      %13 = sbr.rel (0) target = $region5
    $region4: #{tpu_custom_call.1} parent=1 // pred_region
      _
    $region5: #{tpu_custom_call.1} parent=1 // pred_fallthru
      _
    // Predicated region
    $region6: #{tpu_custom_call.1} parent=1 // pred_check
      _
    $region7: #{tpu_custom_call.1} parent=1 // pred_check_branch
      %15 = sbr.rel (0) target = $region9
    $region8: #{tpu_custom_call.1} parent=1 // pred_region
      _
    $region9: #{tpu_custom_call.1} parent=1 // pred_fallthru
      _
    // Predicated region
    $region10: #{tpu_custom_call.1} parent=1 // pred_check
      _
    $region11: #{tpu_custom_call.1} parent=1 // pred_check_branch
      %17 = sbr.rel (0) target = $region13
    $region12: #{tpu_custom_call.1} parent=1 // pred_region
      _
    $region13: #{tpu_custom_call.1} parent=1 // pred_fallthru
      _
    // Predicated region
    $region14: #{tpu_custom_call.1} parent=1 // pred_check
      _
    $region15: #{tpu_custom_call.1} parent=1 // pred_check_branch
      %19 = sbr.rel (0) target = $region17
    $region16: #{tpu_custom_call.1} parent=1 // pred_region
      _
    $region17: #{tpu_custom_call.1} parent=1 // pred_fallthru
      _
    // Predicated region
    $region18: #{tpu_custom_call.1} parent=1 // pred_check
      _
    $region19: #{tpu_custom_call.1} parent=1 // pred_check_branch
      %21 = sbr.rel (0) target = $region21
    $region20: #{tpu_custom_call.1} parent=1 // pred_region
      _
    $region21: #{tpu_custom_call.1} parent=1 // pred_fallthru
      _
    // Predicated region
    $region22: #{tpu_custom_call.1} parent=1 // pred_check
      _
    $region23: #{tpu_custom_call.1} parent=1 // pred_check_branch
      %23 = sbr.rel (0) target = $region25
    $region24: #{tpu_custom_call.1} parent=1 // pred_region
      _
    $region25: #{tpu_custom_call.1} parent=1 // pred_fallthru
      _
    %p25 = scmp.eq.s32.totalorder 0, 0
    // Predicated region
    $region26: #{tpu_custom_call.1} parent=1 // pred_check
      %p26 = pneg %p25
    $region27: #{tpu_custom_call.1} parent=1 // pred_check_branch
      %28 = sbr.rel (%p26) target = $region29
    $region28: #{tpu_custom_call.1} parent=1 // pred_region
      %vm29 = vcmask 261120
      %30 = vst.msk [vmem:[#allocation2] sm:$0xff] %vm29, 0.0
      %31 = vst.msk [vmem:[#allocation2 + $0x8] sm:$0xff] %vm29, 0.0
      %32 = vst.msk [vmem:[#allocation2 + $0x10] sm:$0xff] %vm29, 0.0
      %33 = vst.msk [vmem:[#allocation2 + $0x18] sm:$0xff] %vm29, 0.0
    $region29: #{tpu_custom_call.1} parent=1 // pred_fallthru
      _
    %v34 = vld [vmem:[%s0] sm:$0xff]
    %v35 = vunpack.c.l.s8.bf16 %v34
    %v36 = vunpack.c.h.s8.bf16 %v34
    %s37 = smul.u32 0, 128
    %s38 = sshra.s32 %s37, 3
    %s39 = sand.u32 %s37, 7
    %s40 = smul.addr %s38, 4
    %s41 = scalar_lea.vmem %s1, %s40
    %v42 = vld [vmem:[%s41] sm:$0xf]
    %v43 = vld [vmem:[%s41 + $0x4] sm:$0xf]
    %v44 = vld [vmem:[%s41 + $0x8] sm:$0xf]
    %v45 = vld [vmem:[%s41 + $0xc] sm:$0xf]
    %v46 = vld [vmem:[%s41 + $0x10] sm:$0xf]
    %v47 = vld [vmem:[%s41 + $0x14] sm:$0xf]
    %v48 = vld [vmem:[%s41 + $0x18] sm:$0xf]
    %v49 = vld [vmem:[%s41 + $0x1c] sm:$0xf]
    %v50 = vld [vmem:[%s41 + $0x20] sm:$0xf]
    %v51 = vld [vmem:[%s41 + $0x24] sm:$0xf]
    %v52 = vld [vmem:[%s41 + $0x28] sm:$0xf]
    %v53 = vld [vmem:[%s41 + $0x2c] sm:$0xf]
    %v54 = vld [vmem:[%s41 + $0x30] sm:$0xf]
    %v55 = vld [vmem:[%s41 + $0x34] sm:$0xf]
    %v56 = vld [vmem:[%s41 + $0x38] sm:$0xf]
    %v57 = vld [vmem:[%s41 + $0x3c] sm:$0xf]
    %v58 = vld [vmem:[#allocation2] sm:$0xff]
    %v59 = vld [vmem:[#allocation2 + $0x8] sm:$0xff]
    %v60 = vld [vmem:[#allocation2 + $0x10] sm:$0xff]
    %v61 = vld [vmem:[#allocation2 + $0x18] sm:$0xff]
    %v78 = vunpack.c.l.b16 %v42
    %v79 = vunpack.c.l.b16 %v43
    %v80 = vunpack.c.l.b16 %v44
    %v81 = vunpack.c.l.b16 %v45
    %v82 = vunpack.c.l.b16 %v46
    %v83 = vunpack.c.l.b16 %v47
    %v84 = vunpack.c.l.b16 %v48
    %v85 = vunpack.c.l.b16 %v49
    %v86 = vunpack.c.l.b16 %v50
    %v87 = vunpack.c.l.b16 %v51
    %v88 = vunpack.c.l.b16 %v52
    %v89 = vunpack.c.l.b16 %v53
    %v90 = vunpack.c.l.b16 %v54
    %v91 = vunpack.c.l.b16 %v55
    %v92 = vunpack.c.l.b16 %v56
    %v93 = vunpack.c.l.b16 %v57
    %v94 = vpack.c.b16 %v79, %v78
    %v95 = vpack.c.b16 %v81, %v80
    %v96 = vpack.c.b16 %v83, %v82
    %v97 = vpack.c.b16 %v85, %v84
    %v98 = vpack.c.b16 %v87, %v86
    %v99 = vpack.c.b16 %v89, %v88
    %v100 = vpack.c.b16 %v91, %v90
    %v101 = vpack.c.b16 %v93, %v92
    %110 = vmatprep.subr.bf16.mxu0 0
    %111 = vmatpush1.bf16.msra.mxu0 %v94
    %112 = vmatprep.subr.bf16.mxu0 0
    %113 = vmatpush1.bf16.msra.mxu0 %v95
    %114 = vmatprep.subr.bf16.mxu0 0
    %115 = vmatpush1.bf16.msra.mxu0 %v96
    %116 = vmatprep.subr.bf16.mxu0 0
    %117 = vmatpush1.bf16.msra.mxu0 %v97
    %118 = vmatprep.subr.bf16.mxu0 0
    %119 = vmatpush1.bf16.msra.mxu0 %v98
    %120 = vmatprep.subr.bf16.mxu0 0
    %121 = vmatpush1.bf16.msra.mxu0 %v99
    %122 = vmatprep.subr.bf16.mxu0 0
    %123 = vmatpush1.bf16.msra.mxu0 %v100
    %124 = vmatprep.subr.bf16.mxu0 0
    %125 = vmatpush1.bf16.msra.mxu0 %v101
    %126 = vmatprep.subr.bf16.mxu0 0
    %127 = vmatpush1.bf16.msra.mxu0 0
    %128 = vmatprep.subr.bf16.mxu0 0
    %129 = vmatpush1.bf16.msra.mxu0 0
    %130 = vmatprep.subr.bf16.mxu0 0
    %131 = vmatpush1.bf16.msra.mxu0 0
    %132 = vmatprep.subr.bf16.mxu0 0
    %133 = vmatpush1.bf16.msra.mxu0 0
    %134 = vmatprep.subr.bf16.mxu0 0
    %135 = vmatpush1.bf16.msra.mxu0 0
    %136 = vmatprep.subr.bf16.mxu0 0
    %137 = vmatpush1.bf16.msra.mxu0 0
    %138 = vmatprep.subr.bf16.mxu0 0
    %139 = vmatpush1.bf16.msra.mxu0 0
    %140 = vmatprep.subr.bf16.mxu0 0
    %141 = vmatpush1.bf16.msra.mxu0 0
    %142 = vmatprep.mubr.bf16.mxu0 0
    %143 = vmatmul.mubr.bf16.gmra.mrb[0].mxu0 %v35
    %v144 = vpop.f32.mrb[0].mxu0
    %v145 = vadd.f32 0.0, %v144
    %v146 = vpop.f32.mrb[0].mxu0
    %v147 = vpop.f32.mrb[0].mxu0
    %v148 = vadd.f32 0.0, %v147
    %v149 = vpop.f32.mrb[0].mxu0
    %150 = vmatprep.mubr.bf16.mxu0 0
    %151 = vmatmul.mubr.bf16.gmra.mrb[0].mxu0 %v36
    %v152 = vpop.f32.mrb[0].mxu0
    %v153 = vadd.f32 0.0, %v152
    %v154 = vpop.f32.mrb[0].mxu0
    %v155 = vpop.f32.mrb[0].mxu0
    %v156 = vadd.f32 0.0, %v155
    %v157 = vpop.f32.mrb[0].mxu0
    %158 = vdwg.mxu0
    %v159 = vadd.f32 %v58, %v145
    %v160 = vadd.f32 %v59, %v148
    %v161 = vadd.f32 %v60, %v153
    %v162 = vadd.f32 %v61, %v156
    %vm163 = vcmask 261120
    %164 = vst.msk [vmem:[#allocation2] sm:$0xff] %vm163, %v159
    %165 = vst.msk [vmem:[#allocation2 + $0x8] sm:$0xff] %vm163, %v160
    %166 = vst.msk [vmem:[#allocation2 + $0x10] sm:$0xff] %vm163, %v161
    %167 = vst.msk [vmem:[#allocation2 + $0x18] sm:$0xff] %vm163, %v162
    // Predicated region
    $region30: #{tpu_custom_call.1} parent=1 // pred_check
      %p168 = pneg %p25
    $region31: #{tpu_custom_call.1} parent=1 // pred_check_branch
      %170 = sbr.rel (%p168) target = $region33
    $region32: #{tpu_custom_call.1} parent=1 // pred_region
      %v171 = vld [vmem:[#allocation2] sm:$0xff]
      %v172 = vld [vmem:[#allocation2 + $0x8] sm:$0xff]
      %v173 = vld [vmem:[#allocation2 + $0x10] sm:$0xff]
      %v174 = vld [vmem:[#allocation2 + $0x18] sm:$0xff]
      %v175 = vld [vmem:[%s3] sm:$0xff]
      %v176 = vld [vmem:[%s3 + $0x8] sm:$0xff]
      %v177 = vld [vmem:[%s3 + $0x10] sm:$0xff]
      %v178 = vld [vmem:[%s3 + $0x18] sm:$0xff]
      %180 = vset.pattern.permute.xlu0 0
      %181 = vperm.xlu0 %180, %v175
      %v182 = vpop.permute.xlu0 %181
      %185 = vset.pattern.permute.xlu0 0
      %186 = vperm.xlu0 %185, %v176
      %v187 = vpop.permute.xlu0 %186
      %190 = vset.pattern.permute.xlu0 0
      %191 = vperm.xlu0 %190, %v177
      %v192 = vpop.permute.xlu0 %191
      %195 = vset.pattern.permute.xlu0 0
      %196 = vperm.xlu0 %195, %v178
      %v197 = vpop.permute.xlu0 %196
      %v199 = vmul.f32 %v171, %v182
      %v200 = vmul.f32 %v172, %v187
      %v201 = vmul.f32 %v173, %v192
      %v202 = vmul.f32 %v174, %v197
      %v203 = vpack.c.bf16 %v200, %v199
      %v204 = vpack.c.bf16 %v202, %v201
      %v205 = vld [vmem:[%s2] sm:$0xf]
      %v206 = vld [vmem:[%s2 + $0x4] sm:$0xf]
      %v207 = vld [vmem:[%s2 + $0x8] sm:$0xf]
      %v208 = vld [vmem:[%s2 + $0xc] sm:$0xf]
      %v209 = vld [vmem:[%s4] sm:$0xf]
      %v210 = vld [vmem:[%s4 + $0x4] sm:$0xf]
      %v211 = vld [vmem:[%s4 + $0x8] sm:$0xf]
      %v212 = vld [vmem:[%s4 + $0xc] sm:$0xf]
      %v213 = vld [vmem:[%s5] sm:$0xf]
      %v214 = vld [vmem:[%s5 + $0x4] sm:$0xf]
      %v215 = vld [vmem:[%s5 + $0x8] sm:$0xf]
      %v216 = vld [vmem:[%s5 + $0xc] sm:$0xf]
      %v221 = vunpack.c.l.b16 %v213
      %v222 = vunpack.c.l.b16 %v214
      %v223 = vunpack.c.l.b16 %v215
      %v224 = vunpack.c.l.b16 %v216
      %v225 = vpack.c.b16 %v222, %v221
      %v226 = vpack.c.b16 %v224, %v223
      %v230 = vsel %vm163, %v203, 0
      %v233 = vsel %vm163, %v204, 0
      %235 = vmatprep.subr.bf16.mxu0 0
      %236 = vmatpush1.bf16.msra.mxu0 %v225
      %237 = vmatprep.subr.bf16.mxu0 0
      %238 = vmatpush1.bf16.msra.mxu0 %v226
      %239 = vmatprep.subr.bf16.mxu0 0
      %240 = vmatpush1.bf16.msra.mxu0 0
      %241 = vmatprep.subr.bf16.mxu0 0
      %242 = vmatpush1.bf16.msra.mxu0 0
      %243 = vmatprep.subr.bf16.mxu0 0
      %244 = vmatpush1.bf16.msra.mxu0 0
      %245 = vmatprep.subr.bf16.mxu0 0
      %246 = vmatpush1.bf16.msra.mxu0 0
      %247 = vmatprep.subr.bf16.mxu0 0
      %248 = vmatpush1.bf16.msra.mxu0 0
      %249 = vmatprep.subr.bf16.mxu0 0
      %250 = vmatpush1.bf16.msra.mxu0 0
      %251 = vmatprep.subr.bf16.mxu0 0
      %252 = vmatpush1.bf16.msra.mxu0 0
      %253 = vmatprep.subr.bf16.mxu0 0
      %254 = vmatpush1.bf16.msra.mxu0 0
      %255 = vmatprep.subr.bf16.mxu0 0
      %256 = vmatpush1.bf16.msra.mxu0 0
      %257 = vmatprep.subr.bf16.mxu0 0
      %258 = vmatpush1.bf16.msra.mxu0 0
      %259 = vmatprep.subr.bf16.mxu0 0
      %260 = vmatpush1.bf16.msra.mxu0 0
      %261 = vmatprep.subr.bf16.mxu0 0
      %262 = vmatpush1.bf16.msra.mxu0 0
      %263 = vmatprep.subr.bf16.mxu0 0
      %264 = vmatpush1.bf16.msra.mxu0 0
      %265 = vmatprep.subr.bf16.mxu0 0
      %266 = vmatpush1.bf16.msra.mxu0 0
      %267 = vmatprep.mubr.bf16.mxu0 0
      %268 = vmatmul.mubr.bf16.gmra.mrb[0].mxu0 %v230
      %v269 = vpop.f32.mrb[0].mxu0
      %v270 = vadd.f32 0.0, %v269
      %v271 = vpop.f32.mrb[0].mxu0
      %v272 = vpop.f32.mrb[0].mxu0
      %v273 = vadd.f32 0.0, %v272
      %v274 = vpop.f32.mrb[0].mxu0
      %275 = vmatprep.mubr.bf16.mxu0 0
      %276 = vmatmul.mubr.bf16.gmra.mrb[0].mxu0 %v233
      %v277 = vpop.f32.mrb[0].mxu0
      %v278 = vadd.f32 0.0, %v277
      %v279 = vpop.f32.mrb[0].mxu0
      %v280 = vpop.f32.mrb[0].mxu0
      %v281 = vadd.f32 0.0, %v280
      %v282 = vpop.f32.mrb[0].mxu0
      %283 = vdwg.mxu0
      %v288 = vunpack.c.l.b16 %v205
      %v289 = vunpack.c.l.b16 %v206
      %v290 = vunpack.c.l.b16 %v207
      %v291 = vunpack.c.l.b16 %v208
      %v292 = vpack.c.b16 %v289, %v288
      %v293 = vpack.c.b16 %v291, %v290
      %v298 = vunpack.c.l.b16 %v209
      %v299 = vunpack.c.l.b16 %v210
      %v300 = vunpack.c.l.b16 %v211
      %v301 = vunpack.c.l.b16 %v212
      %v302 = vpack.c.b16 %v299, %v298
      %v303 = vpack.c.b16 %v301, %v300
      %v307 = vsel %vm163, %v292, 0
      %v310 = vsel %vm163, %v293, 0
      %312 = vmatprep.subr.bf16.mxu0 0
      %313 = vmatpush1.bf16.msra.mxu0 %v302
      %314 = vmatprep.subr.bf16.mxu0 0
      %315 = vmatpush1.bf16.msra.mxu0 %v303
      %316 = vmatprep.subr.bf16.mxu0 0
      %317 = vmatpush1.bf16.msra.mxu0 0
      %318 = vmatprep.subr.bf16.mxu0 0
      %319 = vmatpush1.bf16.msra.mxu0 0
      %320 = vmatprep.subr.bf16.mxu0 0
      %321 = vmatpush1.bf16.msra.mxu0 0
      %322 = vmatprep.subr.bf16.mxu0 0
      %323 = vmatpush1.bf16.msra.mxu0 0
      %324 = vmatprep.subr.bf16.mxu0 0
      %325 = vmatpush1.bf16.msra.mxu0 0
      %326 = vmatprep.subr.bf16.mxu0 0
      %327 = vmatpush1.bf16.msra.mxu0 0
      %328 = vmatprep.subr.bf16.mxu0 0
      %329 = vmatpush1.bf16.msra.mxu0 0
      %330 = vmatprep.subr.bf16.mxu0 0
      %331 = vmatpush1.bf16.msra.mxu0 0
      %332 = vmatprep.subr.bf16.mxu0 0
      %333 = vmatpush1.bf16.msra.mxu0 0
      %334 = vmatprep.subr.bf16.mxu0 0
      %335 = vmatpush1.bf16.msra.mxu0 0
      %336 = vmatprep.subr.bf16.mxu0 0
      %337 = vmatpush1.bf16.msra.mxu0 0
      %338 = vmatprep.subr.bf16.mxu0 0
      %339 = vmatpush1.bf16.msra.mxu0 0
      %340 = vmatprep.subr.bf16.mxu0 0
      %341 = vmatpush1.bf16.msra.mxu0 0
      %342 = vmatprep.subr.bf16.mxu0 0
      %343 = vmatpush1.bf16.msra.mxu0 0
      %344 = vmatprep.mubr.bf16.mxu0 0
      %345 = vmatmul.mubr.bf16.gmra.mrb[0].mxu0 %v307
      %v346 = vpop.f32.mrb[0].mxu0
      %v347 = vadd.f32 %v270, %v346
      %v348 = vpop.f32.mrb[0].mxu0
      %v349 = vpop.f32.mrb[0].mxu0
      %v350 = vadd.f32 %v273, %v349
      %v351 = vpop.f32.mrb[0].mxu0
      %352 = vmatprep.mubr.bf16.mxu0 0
      %353 = vmatmul.mubr.bf16.gmra.mrb[0].mxu0 %v310
      %v354 = vpop.f32.mrb[0].mxu0
      %v355 = vadd.f32 %v278, %v354
      %v356 = vpop.f32.mrb[0].mxu0
      %v357 = vpop.f32.mrb[0].mxu0
      %v358 = vadd.f32 %v281, %v357
      %v359 = vpop.f32.mrb[0].mxu0
      %360 = vdwg.mxu0
      %v361 = vmax.f32 %v347, 0.0
      %v362 = vmax.f32 %v350, 0.0
      %v363 = vmax.f32 %v355, 0.0
      %v364 = vmax.f32 %v358, 0.0
      %v365 = vpack.c.bf16 %v362, %v361
      %v366 = vpack.c.bf16 %v364, %v363
      %v369 = vunpack.c.l.b16 %v365
      %v370 = vunpack.c.h.b16 %v365
      %v371 = vunpack.c.l.b16 %v366
      %v372 = vunpack.c.h.b16 %v366
      %v373 = vpack.c.b16 %v369, %v369
      %v374 = vpack.c.b16 %v370, %v370
      %v375 = vpack.c.b16 %v371, %v371
      %v376 = vpack.c.b16 %v372, %v372
      %381 = vst [vmem:[#allocation3] sm:$0xf] %v373
      %382 = vst [vmem:[#allocation3 + $0x4] sm:$0xf] %v374
      %383 = vst [vmem:[#allocation3 + $0x8] sm:$0xf] %v375
      %384 = vst [vmem:[#allocation3 + $0xc] sm:$0xf] %v376
    $region33: #{tpu_custom_call.1} parent=1 // pred_fallthru
      _
    // Predicated region
    $region34: #{tpu_custom_call.1} parent=1 // pred_check
      _
    $region35: #{tpu_custom_call.1} parent=1 // pred_check_branch
      %386 = sbr.rel (0) target = $region37
    $region36: #{tpu_custom_call.1} parent=1 // pred_region
      %s388 = ssub.s32 256, 256
      %389 = vsyncadd [#allocation4], %s388
      %s390 = sshll.u32 [#allocation3], 4
      %s391 = int_to_ptr.vmem [resolvable:$true] %s390
      %396 = dma.vmem_to_hbm [thread:$0]  %s391, 256, %s6, [#allocation4], 64, 64, 4
    $region37: #{tpu_custom_call.1} parent=1 // pred_fallthru
      _
    // Predicated region
    $region38: #{tpu_custom_call.1} parent=1 // pred_check
      _
    $region39: #{tpu_custom_call.1} parent=1 // pred_check_branch
      %398 = sbr.rel (0) target = $region41
    $region40: #{tpu_custom_call.1} parent=1 // pred_region
      %399 = dma.done [#allocation4], 256
    $region41: #{tpu_custom_call.1} parent=1 // pred_fallthru
      _
    %400 = vsyncpa [#allocation4], 1

</llo_original>
